<compile_context>
chip_gen: v7x
topology: tpu7x:2x2x1
jax: 0.10.0
libtpu: 0.0.40
codegen_flags: <defaults>
</compile_context>

<pallas_src>
import functools

import jax
import jax.numpy as jnp
from jax.experimental import pallas as pl
from jax.experimental.pallas import tpu as pltpu

_LANE = 128


# ----------------------------------------------------------------------------
# VMEM-capacity query (per-generation tile sizing).
# ----------------------------------------------------------------------------
def _vmem_capacity_bytes():
    try:
        return int(pltpu.get_tpu_info().vmem_capacity_bytes)
    except Exception:
        # Conservative fallback: v7x per-TensorCore VMEM.
        return 64 * 1024 * 1024


def _padded_lane_width(w):
    """Width as laid out in VMEM (lane dim rounds up to 128)."""
    return -(-w // _LANE) * _LANE


def _sublane_pack(dtype):
    """Rows per VMEM sublane-tile for this dtype (f32:8, bf16:16, int8:32)."""
    return max(8, 32 // jnp.dtype(dtype).itemsize)


# ----------------------------------------------------------------------------
# Fused Pallas kernel: padded elementwise sum for every shared degree.
# ----------------------------------------------------------------------------
def _gsum_fused_kernel(widths, *refs):
    """Fused padded sum over several degrees.

    widths: static tuple of (w_wide, w_narrow) flattened C*M widths per degree,
            where the "wide" input has >= channels.
    refs:   [a_0, b_0, a_1, b_1, ..., o_0, o_1, ...]
            a_d = wider (or equal) input tile, b_d = narrower input tile.
    """
    n_deg = len(widths)
    in_refs = refs[: 2 * n_deg]
    out_refs = refs[2 * n_deg:]
    for i, (w_wide, w_narrow) in enumerate(widths):
        a_ref = in_refs[2 * i]
        b_ref = in_refs[2 * i + 1]
        o_ref = out_refs[i]
        dt = o_ref.dtype
        a = a_ref[...]
        b = b_ref[...]
        if w_wide == w_narrow:
            # Same channel count: plain elementwise add, one full-width store.
            o_ref[...] = a.astype(dt) + b.astype(dt)
        else:
            # Overlap channels: elementwise add (split write, no zero-pad temp).
            o_ref[:, :w_narrow] = a[:, :w_narrow].astype(dt) + b.astype(dt)
            # Tail channels exist only in the wider input: straight copy.
            o_ref[:, w_narrow:] = a[:, w_narrow:].astype(dt)


def gsum_fused(pairs, *, tile_rows=None):
    """Fused padded sums.

    pairs: list of (a, b) 2-D arrays, both [N, C*M]-flattened, with
           a.shape[1] >= b.shape[1] (a is the wider-or-equal input).
    Returns a tuple of [N, a.shape[1]] arrays (promoted dtype).
    """
    assert pairs, "gsum_fused needs at least one degree pair"
    n = pairs[0][0].shape[0]

    widths = []
    out_shapes = []
    padded_row_bytes = 0   # per-node-row VMEM footprint (lane-padded)
    hbm_row_bytes = 0      # per-node-row HBM traffic (logical)
    flops_per_row = 0
    max_sublane = 8
    for a, b in pairs:
        assert a.ndim == 2 and b.ndim == 2
        assert a.shape[0] == n and b.shape[0] == n
        assert a.shape[1] >= b.shape[1]
        out_dtype = jnp.result_type(a.dtype, b.dtype)
        wa, wb = a.shape[1], b.shape[1]
        widths.append((wa, wb))
        out_shapes.append(jax.ShapeDtypeStruct((n, wa), out_dtype))
        sza = jnp.dtype(a.dtype).itemsize
        szb = jnp.dtype(b.dtype).itemsize
        szo = jnp.dtype(out_dtype).itemsize
        padded_row_bytes += (_padded_lane_width(wa) * sza
                             + _padded_lane_width(wb) * szb
                             + _padded_lane_width(wa) * szo)
        hbm_row_bytes += wa * sza + wb * szb + wa * szo
        flops_per_row += wb
        max_sublane = max(max_sublane, _sublane_pack(a.dtype),
                          _sublane_pack(b.dtype), _sublane_pack(out_dtype))

    vmem_cap = _vmem_capacity_bytes()
    vmem_limit = min(int(vmem_cap * 0.9), 128 * 1024 * 1024)

    if tile_rows is None:
        # Keep the double-buffered (A + B + OUT) tile footprint (as physically
        # laid out in VMEM) under ~40% of capacity; per-step pipeline overhead
        # then amortizes over a large tile.
        budget = int(vmem_cap * 0.4)
        tile_rows = budget // (2 * padded_row_bytes)
        tile_rows = max(max_sublane, (tile_rows // max_sublane) * max_sublane)
    if tile_rows >= n:
        tile_rows = n                       # one full-extent block (always legal)
    else:
        tile_rows = max(8, (tile_rows // 8) * 8)   # sublane-aligned node tile

    grid = (pl.cdiv(n, tile_rows),)          # ragged last tile handled by Pallas

    in_specs = []
    flat_inputs = []
    for a, b in pairs:
        in_specs.append(pl.BlockSpec((tile_rows, a.shape[1]), lambda i: (i, 0)))
        in_specs.append(pl.BlockSpec((tile_rows, b.shape[1]), lambda i: (i, 0)))
        flat_inputs += [a, b]
    out_specs = tuple(
        pl.BlockSpec((tile_rows, w_wide), lambda i: (i, 0))
        for (w_wide, _) in widths
    )

    cost = pl.CostEstimate(
        flops=int(n * flops_per_row),
        transcendentals=0,
        bytes_accessed=int(n * hbm_row_bytes),
    )

    return pl.pallas_call(
        functools.partial(_gsum_fused_kernel, tuple(widths)),
        out_shape=tuple(out_shapes),
        grid=grid,
        in_specs=in_specs,
        out_specs=out_specs,
        compiler_params=pltpu.CompilerParams(
            dimension_semantics=("parallel",),
            vmem_limit_bytes=vmem_limit,
        ),
        cost_estimate=cost,
    )(*flat_inputs)


# ----------------------------------------------------------------------------
# GSumSE3 module (JAX / Pallas).  No learned parameters.
# ----------------------------------------------------------------------------
class GSumSE3:
    """SE(3)-equivariant summation layer (Pallas TPU implementation)."""

    def __init__(self, f_in1, f_in2):
        # f_in1 / f_in2: dicts mapping degree (int) -> number of channels.
        self.f_in1 = dict(f_in1)
        self.f_in2 = dict(f_in2)
        # Fiber.combine_max: union of degrees, channels = max of the two.
        degrees = sorted(set(self.f_in1) | set(self.f_in2))
        self.f_out = {
            d: max(self.f_in1.get(d, 0), self.f_in2.get(d, 0)) for d in degrees
        }

    def __call__(self, in1, in2, tile_rows=None):
        out = {}
        pairs = []
        shared = []  # (key, c_out, m)
        for d in sorted(self.f_out):
            key = "%d" % d
            if not (key in in1 and key in in2):
                # Degree present in only one input: pass through unchanged.
                out[key] = in1[key] if key in in1 else in2[key]
                continue
            x1, x2 = in1[key], in2[key]
            n, c1, m = x1.shape
            n2, c2, m2 = x2.shape
            assert n == n2 and m == m2
            # Order so the wider (or equal) tensor is first; its tail channels
            # are copied straight through inside the kernel.
            a, b = (x1, x2) if c1 >= c2 else (x2, x1)
            pairs.append((a.reshape(n, a.shape[1] * m),
                          b.reshape(n, b.shape[1] * m)))
            shared.append((key, max(c1, c2), m))

        if pairs:
            results = gsum_fused(pairs, tile_rows=tile_rows)
            for (key, c_out, m), r in zip(shared, results):
                out[key] = r.reshape(r.shape[0], c_out, m)
        return out


# ----------------------------------------------------------------------------
# Pure-JAX reference (mirrors the PyTorch forward exactly) for sanity check.
# ----------------------------------------------------------------------------
def _gsum_ref(in1, in2, degrees):
    out = {}
    for d in degrees:
        key = "%d" % d
        if not (key in in1 and key in in2):
            out[key] = in1[key] if key in in1 else in2[key]
        else:
            a, b = in1[key], in2[key]
            c_out = max(a.shape[1], b.shape[1])
            dt = jnp.result_type(a.dtype, b.dtype)
            a = jnp.pad(a.astype(dt), ((0, 0), (0, c_out - a.shape[1]), (0, 0)))
            b = jnp.pad(b.astype(dt), ((0, 0), (0, c_out - b.shape[1]), (0, 0)))
            out[key] = a + b
    return out


if __name__ == "__main__":
    key = jax.random.PRNGKey(0)

    # Fibers: degree -> channels.
    #   degree 0/1: unequal channels (exercises pad + split-write path)
    #   degree 2:   only in f_in2 (pass-through)
    #   degree 3:   equal channels (exercises single full-width store path)
    f_in1 = {0: 4, 1: 8, 3: 6}
    f_in2 = {0: 8, 1: 4, 2: 4, 3: 6}

    def make_feats(key, fiber, n):
        feats = {}
        for d, c in sorted(fiber.items()):
            key, sub = jax.random.split(key)
            feats["%d" % d] = jax.random.normal(
                sub, (n, c, 2 * d + 1), dtype=jnp.float32
            )
        return key, feats

    layer = GSumSE3(f_in1, f_in2)

    # --- Test 1: default (auto) tiling, small node count -> single block. ---
    n_nodes = 16
    key, in1 = make_feats(key, f_in1, n_nodes)
    key, in2 = make_feats(key, f_in2, n_nodes)
    out = layer(in1, in2)
    out = jax.tree_util.tree_map(jax.block_until_ready, out)

    ref = _gsum_ref(in1, in2, sorted(layer.f_out))
    for k in ref:
        assert out[k].shape == ref[k].shape, (k, out[k].shape, ref[k].shape)
        assert out[k].dtype == ref[k].dtype, (k, out[k].dtype, ref[k].dtype)
        assert jnp.allclose(out[k], ref[k], atol=1e-6), f"mismatch at degree {k}"

    # --- Test 2: forced small node tile + node count not divisible by the ---
    # --- tile, exercising the pl.cdiv grid with a ragged last tile.        ---
    n_nodes2 = 20
    key, in1b = make_feats(key, f_in1, n_nodes2)
    key, in2b = make_feats(key, f_in2, n_nodes2)
    out2 = layer(in1b, in2b, tile_rows=8)
    out2 = jax.tree_util.tree_map(jax.block_until_ready, out2)

    ref2 = _gsum_ref(in1b, in2b, sorted(layer.f_out))
    for k in ref2:
        assert out2[k].shape == ref2[k].shape
        assert jnp.allclose(out2[k], ref2[k], atol=1e-6), (
            f"mismatch (ragged) at degree {k}"
        )

    print("KERNEL_OK")
</pallas_src>

<mosaic_0001>
module attributes {stable_mosaic.version = 11 : i64} {
  func.func @_gsum_fused_kernel(%arg0: i32, %arg1: memref<16x8xf32, #tpu.memory_space<vmem>>, %arg2: memref<16x4xf32, #tpu.memory_space<vmem>>, %arg3: memref<16x24xf32, #tpu.memory_space<vmem>>, %arg4: memref<16x12xf32, #tpu.memory_space<vmem>>, %arg5: memref<16x42xf32, #tpu.memory_space<vmem>>, %arg6: memref<16x42xf32, #tpu.memory_space<vmem>>, %arg7: memref<16x8xf32, #tpu.memory_space<vmem>>, %arg8: memref<16x24xf32, #tpu.memory_space<vmem>>, %arg9: memref<16x42xf32, #tpu.memory_space<vmem>>) attributes {dimension_semantics = [#tpu.dimension_semantics<parallel>], iteration_bounds = array<i64: 1>, scalar_prefetch = 0 : i64, scratch_operands = 0 : i64, tpu.core_type = #tpu.core_type<tc>, window_params = [{transform_indices = @transform_0, window_bounds = array<i64: 16, 8>}, {transform_indices = @transform_1, window_bounds = array<i64: 16, 4>}, {transform_indices = @transform_2, window_bounds = array<i64: 16, 24>}, {transform_indices = @transform_3, window_bounds = array<i64: 16, 12>}, {transform_indices = @transform_4, window_bounds = array<i64: 16, 42>}, {transform_indices = @transform_5, window_bounds = array<i64: 16, 42>}, {transform_indices = @transform_6, window_bounds = array<i64: 16, 8>}, {transform_indices = @transform_7, window_bounds = array<i64: 16, 24>}, {transform_indices = @transform_8, window_bounds = array<i64: 16, 42>}]} {
    %c0 = arith.constant 0 : index
    %c0_0 = arith.constant 0 : index
    %0 = vector.load %arg1[%c0, %c0_0] : memref<16x8xf32, #tpu.memory_space<vmem>>, vector<16x8xf32>
    %c0_1 = arith.constant 0 : index
    %c0_2 = arith.constant 0 : index
    %1 = vector.load %arg2[%c0_1, %c0_2] : memref<16x4xf32, #tpu.memory_space<vmem>>, vector<16x4xf32>
    %2 = vector.extract_strided_slice %0 {offsets = [0, 0], sizes = [16, 4], strides = [1, 1]} : vector<16x8xf32> to vector<16x4xf32>
    %3 = arith.addf %2, %1 : vector<16x4xf32>
    %c0_3 = arith.constant 0 : index
    %c0_4 = arith.constant 0 : index
    %4 = vector.load %arg7[%c0_3, %c0_4] : memref<16x8xf32, #tpu.memory_space<vmem>>, vector<16x4xf32>
    tpu.vector_store %arg7[%c0_3, %c0_4], %3 {strides = array<i32>} : memref<16x8xf32, #tpu.memory_space<vmem>>, vector<16x4xf32>,
    %5 = vector.extract_strided_slice %0 {offsets = [0, 4], sizes = [16, 4], strides = [1, 1]} : vector<16x8xf32> to vector<16x4xf32>
    %c0_5 = arith.constant 0 : index
    %c4 = arith.constant 4 : index
    %6 = vector.load %arg7[%c0_5, %c4] : memref<16x8xf32, #tpu.memory_space<vmem>>, vector<16x4xf32>
    tpu.vector_store %arg7[%c0_5, %c4], %5 {strides = array<i32>} : memref<16x8xf32, #tpu.memory_space<vmem>>, vector<16x4xf32>,
    %c0_6 = arith.constant 0 : index
    %c0_7 = arith.constant 0 : index
    %7 = vector.load %arg3[%c0_6, %c0_7] : memref<16x24xf32, #tpu.memory_space<vmem>>, vector<16x24xf32>
    %c0_8 = arith.constant 0 : index
    %c0_9 = arith.constant 0 : index
    %8 = vector.load %arg4[%c0_8, %c0_9] : memref<16x12xf32, #tpu.memory_space<vmem>>, vector<16x12xf32>
    %9 = vector.extract_strided_slice %7 {offsets = [0, 0], sizes = [16, 12], strides = [1, 1]} : vector<16x24xf32> to vector<16x12xf32>
    %10 = arith.addf %9, %8 : vector<16x12xf32>
    %c0_10 = arith.constant 0 : index
    %c0_11 = arith.constant 0 : index
    %11 = vector.load %arg8[%c0_10, %c0_11] : memref<16x24xf32, #tpu.memory_space<vmem>>, vector<16x12xf32>
    tpu.vector_store %arg8[%c0_10, %c0_11], %10 {strides = array<i32>} : memref<16x24xf32, #tpu.memory_space<vmem>>, vector<16x12xf32>,
    %12 = vector.extract_strided_slice %7 {offsets = [0, 12], sizes = [16, 12], strides = [1, 1]} : vector<16x24xf32> to vector<16x12xf32>
    %c0_12 = arith.constant 0 : index
    %c12 = arith.constant 12 : index
    %13 = vector.load %arg8[%c0_12, %c12] : memref<16x24xf32, #tpu.memory_space<vmem>>, vector<16x12xf32>
    tpu.vector_store %arg8[%c0_12, %c12], %12 {strides = array<i32>} : memref<16x24xf32, #tpu.memory_space<vmem>>, vector<16x12xf32>,
    %c0_13 = arith.constant 0 : index
    %c0_14 = arith.constant 0 : index
    %14 = vector.load %arg5[%c0_13, %c0_14] : memref<16x42xf32, #tpu.memory_space<vmem>>, vector<16x42xf32>
    %c0_15 = arith.constant 0 : index
    %c0_16 = arith.constant 0 : index
    %15 = vector.load %arg6[%c0_15, %c0_16] : memref<16x42xf32, #tpu.memory_space<vmem>>, vector<16x42xf32>
    %16 = arith.addf %14, %15 : vector<16x42xf32>
    %c0_17 = arith.constant 0 : index
    %c0_18 = arith.constant 0 : index
    %17 = vector.load %arg9[%c0_17, %c0_18] : memref<16x42xf32, #tpu.memory_space<vmem>>, vector<16x42xf32>
    tpu.vector_store %arg9[%c0_17, %c0_18], %16 {strides = array<i32>} : memref<16x42xf32, #tpu.memory_space<vmem>>, vector<16x42xf32>,
    return
  }
  func.func @transform_0(%arg0: i32) -> (i32, i32) {
    %c0_i32 = arith.constant 0 : i32
    %c0_i32_0 = arith.constant 0 : i32
    return %arg0, %c0_i32 : i32, i32
  }
  func.func @transform_1(%arg0: i32) -> (i32, i32) {
    %c0_i32 = arith.constant 0 : i32
    %c0_i32_0 = arith.constant 0 : i32
    return %arg0, %c0_i32 : i32, i32
  }
  func.func @transform_2(%arg0: i32) -> (i32, i32) {
    %c0_i32 = arith.constant 0 : i32
    %c0_i32_0 = arith.constant 0 : i32
    return %arg0, %c0_i32 : i32, i32
  }
  func.func @transform_3(%arg0: i32) -> (i32, i32) {
    %c0_i32 = arith.constant 0 : i32
    %c0_i32_0 = arith.constant 0 : i32
    return %arg0, %c0_i32 : i32, i32
  }
  func.func @transform_4(%arg0: i32) -> (i32, i32) {
    %c0_i32 = arith.constant 0 : i32
    %c0_i32_0 = arith.constant 0 : i32
    return %arg0, %c0_i32 : i32, i32
  }
  func.func @transform_5(%arg0: i32) -> (i32, i32) {
    %c0_i32 = arith.constant 0 : i32
    %c0_i32_0 = arith.constant 0 : i32
    return %arg0, %c0_i32 : i32, i32
  }
  func.func @transform_6(%arg0: i32) -> (i32, i32) {
    %c0_i32 = arith.constant 0 : i32
    %c0_i32_0 = arith.constant 0 : i32
    return %arg0, %c0_i32 : i32, i32
  }
  func.func @transform_7(%arg0: i32) -> (i32, i32) {
    %c0_i32 = arith.constant 0 : i32
    %c0_i32_0 = arith.constant 0 : i32
    return %arg0, %c0_i32 : i32, i32
  }
  func.func @transform_8(%arg0: i32) -> (i32, i32) {
    %c0_i32 = arith.constant 0 : i32
    %c0_i32_0 = arith.constant 0 : i32
    return %arg0, %c0_i32 : i32, i32
  }
}

</mosaic_0001>

<llo_original>
// kernel: tpu_custom_call.1
$region0: #{tpu_custom_call.1}
  #allocation0 [shape = 'u32[]', space=smem, size = 0x4, offset = 0x4, fixed_abs, tag = 'smem constant byte address 0x4 - core index']
  #allocation1 [shape = 'u32[144,128]{1,0:T(1,128)}', space=vmem, size = 0x12000, scoped, tag = 'internal scratch']
  %s0 = inlined_call_operand.vmem [shape: f32[16,8], index: 0, kind: input, shape index: {}]
  %s1 = inlined_call_operand.vmem [shape: f32[16,4], index: 1, kind: input, shape index: {}]
  %s2 = inlined_call_operand.vmem [shape: f32[16,24], index: 2, kind: input, shape index: {}]
  %s3 = inlined_call_operand.vmem [shape: f32[16,12], index: 3, kind: input, shape index: {}]
  %s4 = inlined_call_operand.vmem [shape: f32[16,42], index: 4, kind: input, shape index: {}]
  %s5 = inlined_call_operand.hbm [shape: f32[16,42], index: 5, kind: input, shape index: {}]
  %s6 = inlined_call_operand.vmem [shape: f32[16,8], index: 6, kind: output, shape index: {0}]
  %s7 = inlined_call_operand.hbm [shape: f32[16,24], index: 7, kind: output, shape index: {1}]
  %s8 = inlined_call_operand.hbm [shape: f32[16,42], index: 8, kind: output, shape index: {2}]
  %9 = xla_tuple %s6, %s7, %s8
  %s10 = sld [smem:[#allocation0]]
  $region54: #{tpu_custom_call.1} parent=0
    _
  %s12 = ssub.s32 1, %s10
  %s13 = scalar_select 0, %s12, %s10
  $region1: #{tpu_custom_call.1} parent=0
    #allocation2 [shape = 'u8[8192]{0}', space=vmem, size = 0x2000, scoped, tag = 'input window, operand 5, single buffered']
    #allocation3 [shape = 's32[1]{0}', space=sflag, size = 0x4, scoped, tag = 'scoped memory for tpu_custom_call.1']
    #allocation4 [shape = 's32[1]{0}', space=sflag, size = 0x4, scoped, tag = 'scoped memory for tpu_custom_call.1']
    #allocation5 [shape = 'u8[8192]{0}', space=vmem, size = 0x2000, scoped, tag = 'output window, operand 1, single buffered']
    #allocation6 [shape = 'u8[8192]{0}', space=vmem, size = 0x2000, scoped, tag = 'output window, operand 2, single buffered']
    #allocation7 [shape = 's32[1]{0}', space=sflag, size = 0x4, scoped, tag = 'scoped memory for tpu_custom_call.1']
    %14 = vsyncpa [#allocation3], 0
    %15 = vsyncpa [#allocation4], 0
    %16 = vsyncpa [#allocation7], 0
    // Predicated region
    $region2: #{tpu_custom_call.1} parent=1 // pred_check
      _
    $region3: #{tpu_custom_call.1} parent=1 // pred_check_branch
      %18 = sbr.rel (0) target = $region5
    $region4: #{tpu_custom_call.1} parent=1 // pred_region
      _
    $region5: #{tpu_custom_call.1} parent=1 // pred_fallthru
      _
    // Predicated region
    $region6: #{tpu_custom_call.1} parent=1 // pred_check
      _
    $region7: #{tpu_custom_call.1} parent=1 // pred_check_branch
      %20 = sbr.rel (0) target = $region9
    $region8: #{tpu_custom_call.1} parent=1 // pred_region
      _
    $region9: #{tpu_custom_call.1} parent=1 // pred_fallthru
      _
    // Predicated region
    $region10: #{tpu_custom_call.1} parent=1 // pred_check
      _
    $region11: #{tpu_custom_call.1} parent=1 // pred_check_branch
      %22 = sbr.rel (0) target = $region13
    $region12: #{tpu_custom_call.1} parent=1 // pred_region
      _
    $region13: #{tpu_custom_call.1} parent=1 // pred_fallthru
      _
    // Predicated region
    $region14: #{tpu_custom_call.1} parent=1 // pred_check
      _
    $region15: #{tpu_custom_call.1} parent=1 // pred_check_branch
      %24 = sbr.rel (0) target = $region17
    $region16: #{tpu_custom_call.1} parent=1 // pred_region
      _
    $region17: #{tpu_custom_call.1} parent=1 // pred_fallthru
      _
    // Predicated region
    $region18: #{tpu_custom_call.1} parent=1 // pred_check
      _
    $region19: #{tpu_custom_call.1} parent=1 // pred_check_branch
      %26 = sbr.rel (0) target = $region21
    $region20: #{tpu_custom_call.1} parent=1 // pred_region
      _
    $region21: #{tpu_custom_call.1} parent=1 // pred_fallthru
      _
    // Predicated region
    $region22: #{tpu_custom_call.1} parent=1 // pred_check
      _
    $region23: #{tpu_custom_call.1} parent=1 // pred_check_branch
      %28 = sbr.rel (0) target = $region25
    $region24: #{tpu_custom_call.1} parent=1 // pred_region
      %s30 = ssub.s32 256, 256
      %31 = vsyncadd [#allocation3], %s30
      %s32 = sshll.u32 [#allocation2], 4
      %s33 = int_to_ptr.vmem [resolvable:$true] %s32
      %38 = dma.hbm_to_vmem [thread:$0]  %s5, 256, %s33, [#allocation3], 128, 128, 8
    $region25: #{tpu_custom_call.1} parent=1 // pred_fallthru
      _
    // Predicated region
    $region26: #{tpu_custom_call.1} parent=1 // pred_check
      _
    $region27: #{tpu_custom_call.1} parent=1 // pred_check_branch
      %40 = sbr.rel (0) target = $region29
    $region28: #{tpu_custom_call.1} parent=1 // pred_region
      %41 = dma.done [#allocation3], 256
    $region29: #{tpu_custom_call.1} parent=1 // pred_fallthru
      _
    %v42 = vld [vmem:[%s0] sm:$0xff]
    %v43 = vld [vmem:[%s0 + $0x8] sm:$0xff]
    %v44 = vld [vmem:[%s1] sm:$0xff]
    %v45 = vld [vmem:[%s1 + $0x8] sm:$0xff]
    %v46 = vadd.f32 %v42, %v44
    %v47 = vadd.f32 %v43, %v45
    %vm48 = vcmask 31744
    %49 = vst.msk [vmem:[%s6] sm:$0xff] %vm48, %v46
    %50 = vst.msk [vmem:[%s6 + $0x8] sm:$0xff] %vm48, %v47
    %vm51 = vcmask 64544
    %52 = vst.msk [vmem:[%s6] sm:$0xff] %vm51, %v42
    %53 = vst.msk [vmem:[%s6 + $0x8] sm:$0xff] %vm51, %v43
    %v54 = vld [vmem:[%s2] sm:$0xff]
    %v55 = vld [vmem:[%s2 + $0x8] sm:$0xff]
    %v56 = vld [vmem:[%s3] sm:$0xff]
    %v57 = vld [vmem:[%s3 + $0x8] sm:$0xff]
    %v58 = vadd.f32 %v54, %v56
    %v59 = vadd.f32 %v55, %v57
    %vm60 = vcmask 97280
    %61 = vst.msk [vmem:[#allocation5] sm:$0xff] %vm60, %v58
    %62 = vst.msk [vmem:[#allocation5 + $0x8] sm:$0xff] %vm60, %v59
    %vm63 = vcmask 195680
    %64 = vst.msk [vmem:[#allocation5] sm:$0xff] %vm63, %v54
    %65 = vst.msk [vmem:[#allocation5 + $0x8] sm:$0xff] %vm63, %v55
    %v66 = vld [vmem:[%s4] sm:$0xff]
    %v67 = vld [vmem:[%s4 + $0x8] sm:$0xff]
    %v68 = vld [vmem:[#allocation2] sm:$0xff]
    %v69 = vld [vmem:[#allocation2 + $0x8] sm:$0xff]
    %v70 = vadd.f32 %v66, %v68
    %v71 = vadd.f32 %v67, %v69
    %vm72 = vcmask 343040
    %73 = vst.msk [vmem:[#allocation6] sm:$0xff] %vm72, %v70
    %74 = vst.msk [vmem:[#allocation6 + $0x8] sm:$0xff] %vm72, %v71
    // Predicated region
    $region30: #{tpu_custom_call.1} parent=1 // pred_check
      _
    $region31: #{tpu_custom_call.1} parent=1 // pred_check_branch
      %76 = sbr.rel (0) target = $region33
    $region32: #{tpu_custom_call.1} parent=1 // pred_region
      _
    $region33: #{tpu_custom_call.1} parent=1 // pred_fallthru
      _
    // Predicated region
    $region34: #{tpu_custom_call.1} parent=1 // pred_check
      _
    $region35: #{tpu_custom_call.1} parent=1 // pred_check_branch
      %78 = sbr.rel (0) target = $region37
    $region36: #{tpu_custom_call.1} parent=1 // pred_region
      %s80 = ssub.s32 256, 256
      %81 = vsyncadd [#allocation4], %s80
      %s82 = sshll.u32 [#allocation5], 4
      %s83 = int_to_ptr.vmem [resolvable:$true] %s82
      %88 = dma.vmem_to_hbm [thread:$0]  %s83, 256, %s7, [#allocation4], 128, 128, 8
    $region37: #{tpu_custom_call.1} parent=1 // pred_fallthru
      _
    // Predicated region
    $region38: #{tpu_custom_call.1} parent=1 // pred_check
      _
    $region39: #{tpu_custom_call.1} parent=1 // pred_check_branch
      %90 = sbr.rel (0) target = $region41
    $region40: #{tpu_custom_call.1} parent=1 // pred_region
      %s92 = ssub.s32 256, 256
      %93 = vsyncadd [#allocation7], %s92
      %s94 = sshll.u32 [#allocation6], 4
      %s95 = int_to_ptr.vmem [resolvable:$true] %s94
      %100 = dma.vmem_to_hbm [thread:$0]  %s95, 256, %s8, [#allocation7], 128, 128, 8
    $region41: #{tpu_custom_call.1} parent=1 // pred_fallthru
      _
    // Predicated region
    $region42: #{tpu_custom_call.1} parent=1 // pred_check
      _
    $region43: #{tpu_custom_call.1} parent=1 // pred_check_branch
      %102 = sbr.rel (0) target = $region45
    $region44: #{tpu_custom_call.1} parent=1 // pred_region
      _
    $region45: #{tpu_custom_call.1} parent=1 // pred_fallthru
      _
    // Predicated region
    $region46: #{tpu_custom_call.1} parent=1 // pred_check
      _
    $region47: #{tpu_custom_call.1} parent=1 // pred_check_branch
      %104 = sbr.rel (0) target = $region49
    $region48: #{tpu_custom_call.1} parent=1 // pred_region
      %105 = dma.done [#allocation4], 256
    $region49: #{tpu_custom_call.1} parent=1 // pred_fallthru
      _
    // Predicated region
    $region50: #{tpu_custom_call.1} parent=1 // pred_check
      _
    $region51: #{tpu_custom_call.1} parent=1 // pred_check_branch
      %107 = sbr.rel (0) target = $region53
    $region52: #{tpu_custom_call.1} parent=1 // pred_region
      %108 = dma.done [#allocation7], 256
    $region53: #{tpu_custom_call.1} parent=1 // pred_fallthru
      _
    %109 = vsyncpa [#allocation3], 1
    %110 = vsyncpa [#allocation4], 1
    %111 = vsyncpa [#allocation7], 1

</llo_original>
